<compile_context>
chip_gen: v5e
topology: v5e:2x2
jax: 0.10.0
libtpu: 0.0.40
codegen_flags: <defaults>
</compile_context>

<pallas_src>
import functools

import numpy as np
import jax
import jax.numpy as jnp
from jax.experimental import pallas as pl
from jax.experimental.pallas import tpu as pltpu

_LANE = 128


def _cdiv(a, b):
    return -(-a // b)


def _robust_dist_kernel(xT_ref,            # (D_in, TB)   f32  (batch on lanes)
                        w1T_ref,           # (H, D_in)    f32
                        b1T_ref,           # (H, 1)       f32
                        w2T_ref,           # (D_out, H)   f32
                        out_ref,           # (1, TB)      f32  lane-dense store
                        *, deltas, use_bf16):
    xT = xT_ref[...]
    w1T = w1T_ref[...]
    b1T = b1T_ref[...]
    w2T = w2T_ref[...]
    TB = xT.shape[1]
    nd = len(deltas)

    mm_dtype = jnp.bfloat16 if use_bf16 else jnp.float32

    # ---- delta-independent work (hoisted out of the sweep) -------------------
    # h0^T = W1^T @ x^T  -> (H, TB), computed once per batch tile.
    h0T = jnp.dot(w1T.astype(mm_dtype), xT.astype(mm_dtype),
                  preferred_element_type=jnp.float32)
    sT = jnp.sum(w1T, axis=1, keepdims=True)          # (H, 1): colsum(W1)^T
    h1T = jnp.tanh(h0T + b1T)                          # hidden of G(x), f32

    # ---- fused delta sweep: stack deltas along the lane axis ------------------
    # (x+d) @ W1 = x @ W1 + d * colsum(W1)  ->  pre-activation stack (H, nd*TB).
    pre = jnp.concatenate([h0T + d * sT for d in deltas], axis=1) + b1T
    h2T = jnp.tanh(pre)                                # ONE big EUP tanh
    diffT = jnp.tile(h1T, (1, nd)) - h2T               # keep subtraction in f32
    # ONE MXU matmul for the whole sweep; b2 cancels in G(x) - G(x+delta).
    dT = jnp.dot(w2T.astype(mm_dtype), diffT.astype(mm_dtype),
                 preferred_element_type=jnp.float32)   # (D_out, nd*TB)
    sq = jnp.sum(dT * dT, axis=0, keepdims=True)       # sublane reduce -> (1, nd*TB)

    # max over deltas on squared distances (sqrt is monotonic) via static
    # lane slices; single sqrt, single unmasked (1, TB) store.
    max_sq = sq[:, 0:TB]
    for k in range(1, nd):
        max_sq = jnp.maximum(max_sq, sq[:, k * TB:(k + 1) * TB])
    out_ref[...] = jnp.sqrt(max_sq)


def _choose_tiling(B, D_in, H, D_out, nd):
    """Lane-aligned batch tile TB, padded batch, grid size and VMEM limit."""
    # f32 bytes per batch column resident in VMEM during one grid step.
    per_col = 4 * (2 * D_in          # x^T tile (double-buffered by the pipeline)
                   + 2 * 1           # output tile (double-buffered)
                   + 2 * H           # h0^T + h1^T
                   + 2 * H * nd      # tanh stack + diff stack
                   + D_out * nd      # second-matmul result
                   + 2 * nd)         # squared distances + headroom
    # Constant-index weight blocks; counted double-buffered to stay safe.
    weight_bytes = 2 * 4 * (H * D_in + H + D_out * H)
    budget = 40 * 1024 * 1024        # leaves headroom under v7x's 64 MiB VMEM

    tb_cap = ((budget - weight_bytes) // max(per_col, 1)) // _LANE * _LANE
    tb_cap = max(_LANE, min(tb_cap, 2048))   # per-step overhead negligible past 2048

    # Target >= 2 grid steps once the batch is large enough so v7x's two
    # TensorCores both get work on the "parallel" axis; single-TC v5e/v6e only
    # pay ~0.35us for the extra step.
    tb_two_steps = _LANE * max(1, _cdiv(_cdiv(B, 2), _LANE))
    TB = min(tb_cap, max(_LANE, tb_two_steps))

    B_pad = _cdiv(B, TB) * TB
    grid = B_pad // TB
    vmem_est = weight_bytes + per_col * TB
    vmem_limit = max(32 * 1024 * 1024, min(2 * vmem_est, 48 * 1024 * 1024))
    return TB, B_pad, grid, int(vmem_limit)


def robust_loss(real_x1_batch, params, *, epsilon, num_max_sample,
                stochastic=False, num_z_sample=1):
    # TODO(synk): stochastic=True resamples z via host np.random.rand inside
    # every cal_dis_avg_z call in the torch code; that host RNG stream cannot
    # be matched bitwise, so only the deterministic (z == 0) path is implemented.
    assert not stochastic
    del num_z_sample

    x = jnp.asarray(real_x1_batch, jnp.float32)
    B, D_in = x.shape
    w1, wz, b1, w2, b2 = params
    del wz, b2                     # z == 0 and b2 cancels in G(x) - G(x+delta)
    w1 = jnp.asarray(w1, jnp.float32)
    b1 = jnp.asarray(b1, jnp.float32)
    w2 = jnp.asarray(w2, jnp.float32)
    H = w1.shape[1]
    D_out = w2.shape[1]

    # Compile-time delta sweep baked into the kernel.  delta == 0 contributes
    # exactly 0 (the max's lower bound) -> dropping it is bit-identical.
    deltas = tuple(float(d)
                   for d in np.linspace(-epsilon, epsilon, num_max_sample)
                   if d != 0.0)
    if not deltas:                 # epsilon == 0: every delta is 0 -> loss is 0
        return jnp.float32(0.0)
    nd = len(deltas)

    TB, B_pad, grid_b, vmem_limit = _choose_tiling(B, D_in, H, D_out, nd)

    # Transposed, lane-dense operands: batch lives on the 128-lane axis.
    # Padding the batch up to a multiple of TB keeps tiles uniform for any B;
    # the padded columns are discarded before the mean.
    xT = jnp.pad(x, ((0, B_pad - B), (0, 0))).T       # (D_in, B_pad)
    w1T = w1.T                                         # (H, D_in)
    b1T = b1.reshape(1, H).T                           # (H, 1)
    w2T = w2.T                                         # (D_out, H)

    # bf16 MXU operands only pay off near MXU-native layer sizes; the tanh and
    # the h1 - h2 subtraction stay in f32 either way (see kernel).
    use_bf16 = min(D_in, H, D_out) >= 256

    kernel = functools.partial(_robust_dist_kernel, deltas=deltas,
                               use_bf16=use_bf16)

    per_sample_dist = pl.pallas_call(
        kernel,
        out_shape=jax.ShapeDtypeStruct((1, B_pad), jnp.float32),
        grid=(grid_b,),
        in_specs=[
            pl.BlockSpec((D_in, TB), lambda i: (0, i)),    # x^T, tiled over batch
            pl.BlockSpec((H, D_in), lambda i: (0, 0)),     # W1^T (whole)
            pl.BlockSpec((H, 1), lambda i: (0, 0)),        # b1^T
            pl.BlockSpec((D_out, H), lambda i: (0, 0)),    # W2^T
        ],
        out_specs=pl.BlockSpec((1, TB), lambda i: (0, i)), # lane-dense store
        compiler_params=pltpu.CompilerParams(
            dimension_semantics=("parallel",),
            vmem_limit_bytes=vmem_limit),
    )(xT, w1T, b1T, w2T)

    # mean over the real batch entries of the per-sample worst-case distance.
    return jnp.mean(per_sample_dist[0, :B])


def reference_loss(real_x1_batch, params, *, epsilon, num_max_sample):
    """Float64 numpy reference mirroring the torch per-sample / per-delta loops."""
    w1, wz, b1, w2, b2 = (np.asarray(p, np.float64) for p in params)
    x = np.asarray(real_x1_batch, np.float64)
    deltas = np.linspace(-epsilon, epsilon, num_max_sample)

    def gen(xx, zz):
        return np.tanh(xx @ w1 + zz * wz + b1) @ w2 + b2

    per_sample = []
    for b in range(x.shape[0]):
        xb = x[b:b + 1]
        zb = np.zeros((1, 1))
        best = -float("inf")
        for dl in deltas:
            diff = gen(xb, zb) - gen(xb + dl, zb)
            best = max(best, float(np.sqrt(np.sum(diff * diff))))
        per_sample.append(best)
    return float(np.mean(per_sample))


if __name__ == "__main__":
    # Module hyper-parameters (stochastic=False path).
    STOCHASTIC = False
    NUM_MAX_SAMPLE = 5
    NUM_Z_SAMPLE = 4
    EPSILON = 0.1

    # Small deterministic shapes.
    B, D_IN, H, D_OUT = 4, 16, 32, 16

    key = jax.random.PRNGKey(0)
    kx, k1, kz, kb1, k2, kb2 = jax.random.split(key, 6)

    real_x1_batch = jax.random.normal(kx, (B, D_IN), dtype=jnp.float32)
    params = (
        jax.random.normal(k1, (D_IN, H), dtype=jnp.float32) * 0.2,   # W1
        jax.random.normal(kz, (1, H), dtype=jnp.float32) * 0.2,      # Wz
        jax.random.normal(kb1, (1, H), dtype=jnp.float32) * 0.1,     # b1
        jax.random.normal(k2, (H, D_OUT), dtype=jnp.float32) * 0.2,  # W2
        jax.random.normal(kb2, (1, D_OUT), dtype=jnp.float32) * 0.1, # b2
    )

    loss = robust_loss(real_x1_batch, params,
                       epsilon=EPSILON,
                       num_max_sample=NUM_MAX_SAMPLE,
                       stochastic=STOCHASTIC,
                       num_z_sample=NUM_Z_SAMPLE)
    loss = jax.block_until_ready(loss)

    ref = reference_loss(real_x1_batch, params,
                         epsilon=EPSILON, num_max_sample=NUM_MAX_SAMPLE)
    # Tolerance covers f32 MXU rounding plus the exact algebraic rewrite
    # (x+d)@W1 = x@W1 + d*colsum(W1), which is amplified by the h1-h2
    # cancellation; it is still tight enough to catch any structural bug.
    np.testing.assert_allclose(float(loss), ref, rtol=1e-3, atol=1e-6)

    print("KERNEL_OK")
</pallas_src>

<mosaic_0001>
module attributes {stable_mosaic.version = 11 : i64} {
  func.func @_robust_dist_kernel(%arg0: i32, %arg1: memref<16x128xf32, #tpu.memory_space<vmem>>, %arg2: memref<32x16xf32, #tpu.memory_space<vmem>>, %arg3: memref<32x1xf32, #tpu.memory_space<vmem>>, %arg4: memref<16x32xf32, #tpu.memory_space<vmem>>, %arg5: memref<1x128xf32, #tpu.memory_space<vmem>>) attributes {dimension_semantics = [#tpu.dimension_semantics<parallel>], iteration_bounds = array<i64: 1>, scalar_prefetch = 0 : i64, scratch_operands = 0 : i64, tpu.core_type = #tpu.core_type<tc>, window_params = [{transform_indices = @transform_0, window_bounds = array<i64: 16, 128>}, {pipeline_mode = #tpu.pipeline_mode<synchronous>, transform_indices = @transform_1, window_bounds = array<i64: 32, 16>}, {pipeline_mode = #tpu.pipeline_mode<synchronous>, transform_indices = @transform_2, window_bounds = array<i64: 32, 1>}, {pipeline_mode = #tpu.pipeline_mode<synchronous>, transform_indices = @transform_3, window_bounds = array<i64: 16, 32>}, {transform_indices = @transform_4, window_bounds = array<i64: 1, 128>}]} {
    %c0 = arith.constant 0 : index
    %c0_0 = arith.constant 0 : index
    %0 = vector.load %arg1[%c0, %c0_0] : memref<16x128xf32, #tpu.memory_space<vmem>>, vector<16x128xf32>
    %c0_1 = arith.constant 0 : index
    %c0_2 = arith.constant 0 : index
    %1 = vector.load %arg2[%c0_1, %c0_2] : memref<32x16xf32, #tpu.memory_space<vmem>>, vector<32x16xf32>
    %c0_3 = arith.constant 0 : index
    %c0_4 = arith.constant 0 : index
    %2 = vector.load %arg3[%c0_3, %c0_4] : memref<32x1xf32, #tpu.memory_space<vmem>>, vector<32x1xf32>
    %c0_5 = arith.constant 0 : index
    %c0_6 = arith.constant 0 : index
    %3 = vector.load %arg4[%c0_5, %c0_6] : memref<16x32xf32, #tpu.memory_space<vmem>>, vector<16x32xf32>
    %cst = arith.constant dense<0.000000e+00> : vector<32x128xf32>
    %4 = tpu.matmul %1, %0, %cst {dimension_numbers = #tpu.dot_dimension_numbers<[1], [0], [0], [1], [0, 0, 1, 1], [], []>} : vector<32x16xf32>, vector<16x128xf32>, vector<32x128xf32> -> vector<32x128xf32>
    %cst_7 = arith.constant dense<0.000000e+00> : vector<32xf32>
    %5 = vector.multi_reduction <add>, %1, %cst_7 [1] : vector<32x16xf32> to vector<32xf32>
    %6 = vector.shape_cast %5 : vector<32xf32> to vector<32x1xf32>
    %7 = vector.broadcast %2 : vector<32x1xf32> to vector<32x128xf32>
    %8 = arith.addf %4, %7 : vector<32x128xf32>
    %9 = math.tanh %8 : vector<32x128xf32>
    %cst_8 = arith.constant -1.000000e-01 : f32
    %10 = vector.broadcast %cst_8 : f32 to vector<32x1xf32>
    %11 = arith.mulf %10, %6 : vector<32x1xf32>
    %12 = vector.broadcast %11 : vector<32x1xf32> to vector<32x128xf32>
    %13 = arith.addf %4, %12 : vector<32x128xf32>
    %cst_9 = arith.constant -5.000000e-02 : f32
    %14 = vector.broadcast %cst_9 : f32 to vector<32x1xf32>
    %15 = arith.mulf %14, %6 : vector<32x1xf32>
    %16 = vector.broadcast %15 : vector<32x1xf32> to vector<32x128xf32>
    %17 = arith.addf %4, %16 : vector<32x128xf32>
    %cst_10 = arith.constant 5.000000e-02 : f32
    %18 = vector.broadcast %cst_10 : f32 to vector<32x1xf32>
    %19 = arith.mulf %18, %6 : vector<32x1xf32>
    %20 = vector.broadcast %19 : vector<32x1xf32> to vector<32x128xf32>
    %21 = arith.addf %4, %20 : vector<32x128xf32>
    %cst_11 = arith.constant 1.000000e-01 : f32
    %22 = vector.broadcast %cst_11 : f32 to vector<32x1xf32>
    %23 = arith.mulf %22, %6 : vector<32x1xf32>
    %24 = vector.broadcast %23 : vector<32x1xf32> to vector<32x128xf32>
    %25 = arith.addf %4, %24 : vector<32x128xf32>
    %26 = tpu.concatenate %13, %17, %21, %25 in 1 : vector<32x128xf32>, vector<32x128xf32>, vector<32x128xf32>, vector<32x128xf32> -> vector<32x512xf32>
    %27 = vector.broadcast %2 : vector<32x1xf32> to vector<32x512xf32>
    %28 = arith.addf %26, %27 : vector<32x512xf32>
    %29 = math.tanh %28 : vector<32x512xf32>
    %30 = tpu.concatenate %9, %9, %9, %9 in 1 : vector<32x128xf32>, vector<32x128xf32>, vector<32x128xf32>, vector<32x128xf32> -> vector<32x512xf32>
    %31 = arith.subf %30, %29 : vector<32x512xf32>
    %cst_12 = arith.constant dense<0.000000e+00> : vector<16x512xf32>
    %32 = tpu.matmul %3, %31, %cst_12 {dimension_numbers = #tpu.dot_dimension_numbers<[1], [0], [0], [1], [0, 0, 1, 1], [], []>} : vector<16x32xf32>, vector<32x512xf32>, vector<16x512xf32> -> vector<16x512xf32>
    %33 = arith.mulf %32, %32 : vector<16x512xf32>
    %cst_13 = arith.constant dense<0.000000e+00> : vector<512xf32>
    %34 = vector.multi_reduction <add>, %33, %cst_13 [0] : vector<16x512xf32> to vector<512xf32>
    %35 = vector.shape_cast %34 : vector<512xf32> to vector<1x512xf32>
    %36 = vector.extract_strided_slice %35 {offsets = [0, 0], sizes = [1, 128], strides = [1, 1]} : vector<1x512xf32> to vector<1x128xf32>
    %37 = vector.extract_strided_slice %35 {offsets = [0, 128], sizes = [1, 128], strides = [1, 1]} : vector<1x512xf32> to vector<1x128xf32>
    %38 = arith.maximumf %36, %37 : vector<1x128xf32>
    %39 = vector.extract_strided_slice %35 {offsets = [0, 256], sizes = [1, 128], strides = [1, 1]} : vector<1x512xf32> to vector<1x128xf32>
    %40 = arith.maximumf %38, %39 : vector<1x128xf32>
    %41 = vector.extract_strided_slice %35 {offsets = [0, 384], sizes = [1, 128], strides = [1, 1]} : vector<1x512xf32> to vector<1x128xf32>
    %42 = arith.maximumf %40, %41 : vector<1x128xf32>
    %43 = math.sqrt %42 : vector<1x128xf32>
    %c0_14 = arith.constant 0 : index
    %c0_15 = arith.constant 0 : index
    %44 = vector.load %arg5[%c0_14, %c0_15] : memref<1x128xf32, #tpu.memory_space<vmem>>, vector<1x128xf32>
    tpu.vector_store %arg5[%c0_14, %c0_15], %43 {strides = array<i32>} : memref<1x128xf32, #tpu.memory_space<vmem>>, vector<1x128xf32>,
    return
  }
  func.func @transform_0(%arg0: i32) -> (i32, i32) {
    %c0_i32 = arith.constant 0 : i32
    %c0_i32_0 = arith.constant 0 : i32
    return %c0_i32, %arg0 : i32, i32
  }
  func.func @transform_1(%arg0: i32) -> (i32, i32) {
    %c0_i32 = arith.constant 0 : i32
    %c0_i32_0 = arith.constant 0 : i32
    %c0_i32_1 = arith.constant 0 : i32
    return %c0_i32, %c0_i32_0 : i32, i32
  }
  func.func @transform_2(%arg0: i32) -> (i32, i32) {
    %c0_i32 = arith.constant 0 : i32
    %c0_i32_0 = arith.constant 0 : i32
    %c0_i32_1 = arith.constant 0 : i32
    return %c0_i32, %c0_i32_0 : i32, i32
  }
  func.func @transform_3(%arg0: i32) -> (i32, i32) {
    %c0_i32 = arith.constant 0 : i32
    %c0_i32_0 = arith.constant 0 : i32
    %c0_i32_1 = arith.constant 0 : i32
    return %c0_i32, %c0_i32_0 : i32, i32
  }
  func.func @transform_4(%arg0: i32) -> (i32, i32) {
    %c0_i32 = arith.constant 0 : i32
    %c0_i32_0 = arith.constant 0 : i32
    return %c0_i32, %arg0 : i32, i32
  }
}

</mosaic_0001>

<llo_original>
// kernel: tpu_custom_call.1
$region0: #{tpu_custom_call.1}
  #allocation0 [shape = 'u32[]', space=smem, size = 0x4, offset = 0x4, fixed_abs, tag = 'smem constant byte address 0x4 - core index']
  #allocation1 [shape = 'u32[72,128]{1,0:T(1,128)}', space=vmem, size = 0x9000, scoped, tag = 'internal scratch']
  %s0 = inlined_call_operand.vmem [shape: f32[16,128], index: 0, kind: input, shape index: {}]
  %s1 = inlined_call_operand.vmem [shape: f32[32,16], index: 1, kind: input, shape index: {}]
  %s2 = inlined_call_operand.vmem [shape: f32[32,1], index: 2, kind: input, shape index: {}]
  %s3 = inlined_call_operand.vmem [shape: f32[16,32], index: 3, kind: input, shape index: {}]
  %s4 = inlined_call_operand.hbm [shape: f32[1,128], index: 4, kind: output, shape index: {}]
  %s5 = sld [smem:[#allocation0]]
  $region26: #{tpu_custom_call.1} parent=0
    _
  %s7 = ssub.s32 1, %s5
  %s8 = scalar_select 0, %s7, %s5
  $region1: #{tpu_custom_call.1} parent=0
    #allocation2 [shape = 'u8[512]{0}', space=vmem, size = 0x400, scoped, tag = 'output window, operand 0, single buffered']
    #allocation3 [shape = 's32[1]{0}', space=sflag, size = 0x4, scoped, tag = 'scoped memory for tpu_custom_call.1']
    %9 = vsyncpa [#allocation3], 0
    // Predicated region
    $region2: #{tpu_custom_call.1} parent=1 // pred_check
      _
    $region3: #{tpu_custom_call.1} parent=1 // pred_check_branch
      %11 = sbr.rel (0) target = $region5
    $region4: #{tpu_custom_call.1} parent=1 // pred_region
      _
    $region5: #{tpu_custom_call.1} parent=1 // pred_fallthru
      _
    // Predicated region
    $region6: #{tpu_custom_call.1} parent=1 // pred_check
      _
    $region7: #{tpu_custom_call.1} parent=1 // pred_check_branch
      %13 = sbr.rel (0) target = $region9
    $region8: #{tpu_custom_call.1} parent=1 // pred_region
      _
    $region9: #{tpu_custom_call.1} parent=1 // pred_fallthru
      _
    // Predicated region
    $region10: #{tpu_custom_call.1} parent=1 // pred_check
      _
    $region11: #{tpu_custom_call.1} parent=1 // pred_check_branch
      %15 = sbr.rel (0) target = $region13
    $region12: #{tpu_custom_call.1} parent=1 // pred_region
      _
    $region13: #{tpu_custom_call.1} parent=1 // pred_fallthru
      _
    // Predicated region
    $region14: #{tpu_custom_call.1} parent=1 // pred_check
      _
    $region15: #{tpu_custom_call.1} parent=1 // pred_check_branch
      %17 = sbr.rel (0) target = $region17
    $region16: #{tpu_custom_call.1} parent=1 // pred_region
      _
    $region17: #{tpu_custom_call.1} parent=1 // pred_fallthru
      _
    %v18 = vld [vmem:[%s0] sm:$0xff]
    %v19 = vld [vmem:[%s0 + $0x8] sm:$0xff]
    %v20 = vld [vmem:[%s1] sm:$0xff]
    %v21 = vld [vmem:[%s1 + $0x8] sm:$0xff]
    %v22 = vld [vmem:[%s1 + $0x10] sm:$0xff]
    %v23 = vld [vmem:[%s1 + $0x18] sm:$0xff]
    %v24 = vld [vmem:[%s2] sm:$0xff]
    %v25 = vld [vmem:[%s2 + $0x8] sm:$0xff]
    %v26 = vld [vmem:[%s2 + $0x10] sm:$0xff]
    %v27 = vld [vmem:[%s2 + $0x18] sm:$0xff]
    %v28 = vld [vmem:[%s3] sm:$0xff]
    %v29 = vld [vmem:[%s3 + $0x8] sm:$0xff]
    %vm30 = vcmask 130048
    %v32 = vsel %vm30, %v20, 0
    %v35 = vsel %vm30, %v21, 0
    %v38 = vsel %vm30, %v22, 0
    %v41 = vsel %vm30, %v23, 0
    %43 = vmatpush.msra.mxu0 0.0
    %44 = vmatpush.msra.mxu0 0.0
    %45 = vmatpush.msra.mxu0 0.0
    %46 = vmatpush.msra.mxu0 0.0
    %47 = vmatpush.msra.mxu0 0.0
    %48 = vmatpush.msra.mxu0 0.0
    %49 = vmatpush.msra.mxu0 0.0
    %50 = vmatpush.msra.mxu0 0.0
    %51 = vmatpush.msra.mxu0 0.0
    %52 = vmatpush.msra.mxu0 0.0
    %53 = vmatpush.msra.mxu0 0.0
    %54 = vmatpush.msra.mxu0 0.0
    %55 = vmatpush.msra.mxu0 0.0
    %56 = vmatpush.msra.mxu0 0.0
    %57 = vmatpush.msra.mxu0 %v19
    %58 = vmatpush.msra.mxu0 %v18
    %59 = vmatmul.f32.gmra.mxu0 %v32
    %v60 = vpop.f32.mrf.mxu0
    %v61 = vadd.f32 0.0, %v60
    %62 = vmatmul.f32.gmra.mxu0 %v35
    %v63 = vpop.f32.mrf.mxu0
    %v64 = vadd.f32 0.0, %v63
    %65 = vmatmul.f32.gmra.mxu0 %v38
    %v66 = vpop.f32.mrf.mxu0
    %v67 = vadd.f32 0.0, %v66
    %68 = vmatmul.f32.gmra.mxu0 %v41
    %v69 = vpop.f32.mrf.mxu0
    %v70 = vadd.f32 0.0, %v69
    %71 = vdwg.mxu0
    %v72 = vsel %vm30, %v20, 0.0
    %73 = vadd.xlane.f32.xlu0 %v72
    %v74 = vpop.xlane.xlu0 %73
    %v75 = vsel %vm30, %v21, 0.0
    %76 = vadd.xlane.f32.xlu0 %v75
    %v77 = vpop.xlane.xlu0 %76
    %v78 = vsel %vm30, %v22, 0.0
    %79 = vadd.xlane.f32.xlu0 %v78
    %v80 = vpop.xlane.xlu0 %79
    %v81 = vsel %vm30, %v23, 0.0
    %82 = vadd.xlane.f32.xlu0 %v81
    %v83 = vpop.xlane.xlu0 %82
    %85 = vset.pattern.permute.xlu0 0
    %86 = vperm.xlu0 %85, %v24
    %v87 = vpop.permute.xlu0 %86
    %90 = vset.pattern.permute.xlu0 0
    %91 = vperm.xlu0 %90, %v25
    %v92 = vpop.permute.xlu0 %91
    %95 = vset.pattern.permute.xlu0 0
    %96 = vperm.xlu0 %95, %v26
    %v97 = vpop.permute.xlu0 %96
    %100 = vset.pattern.permute.xlu0 0
    %101 = vperm.xlu0 %100, %v27
    %v102 = vpop.permute.xlu0 %101
    %v104 = vadd.f32 %v61, %v87
    %v105 = vadd.f32 %v64, %v92
    %v106 = vadd.f32 %v67, %v97
    %v107 = vadd.f32 %v70, %v102
    %v108 = vtanh.pop %v104
    %v109 = vtanh.pop %v105
    %v110 = vtanh.pop %v106
    %v111 = vtanh.pop %v107
    %v112 = vmul.f32 %v74, -0.1
    %v113 = vmul.f32 %v77, -0.1
    %v114 = vmul.f32 %v80, -0.1
    %v115 = vmul.f32 %v83, -0.1
    %v116 = vadd.f32 %v61, %v112
    %v117 = vadd.f32 %v64, %v113
    %v118 = vadd.f32 %v67, %v114
    %v119 = vadd.f32 %v70, %v115
    %v120 = vmul.f32 %v74, -0.05
    %v121 = vmul.f32 %v77, -0.05
    %v122 = vmul.f32 %v80, -0.05
    %v123 = vmul.f32 %v83, -0.05
    %v124 = vadd.f32 %v61, %v120
    %v125 = vadd.f32 %v64, %v121
    %v126 = vadd.f32 %v67, %v122
    %v127 = vadd.f32 %v70, %v123
    %v128 = vmul.f32 %v74, 0.05
    %v129 = vmul.f32 %v77, 0.05
    %v130 = vmul.f32 %v80, 0.05
    %v131 = vmul.f32 %v83, 0.05
    %v132 = vadd.f32 %v61, %v128
    %v133 = vadd.f32 %v64, %v129
    %v134 = vadd.f32 %v67, %v130
    %v135 = vadd.f32 %v70, %v131
    %v136 = vmul.f32 %v74, 0.1
    %v137 = vmul.f32 %v77, 0.1
    %v138 = vmul.f32 %v80, 0.1
    %v139 = vmul.f32 %v83, 0.1
    %v140 = vadd.f32 %v61, %v136
    %v141 = vadd.f32 %v64, %v137
    %v142 = vadd.f32 %v67, %v138
    %v143 = vadd.f32 %v70, %v139
    %v144 = vadd.f32 %v116, %v87
    %v145 = vadd.f32 %v124, %v87
    %v146 = vadd.f32 %v132, %v87
    %v147 = vadd.f32 %v140, %v87
    %v148 = vadd.f32 %v117, %v92
    %v149 = vadd.f32 %v125, %v92
    %v150 = vadd.f32 %v133, %v92
    %v151 = vadd.f32 %v141, %v92
    %v152 = vadd.f32 %v118, %v97
    %v153 = vadd.f32 %v126, %v97
    %v154 = vadd.f32 %v134, %v97
    %v155 = vadd.f32 %v142, %v97
    %v156 = vadd.f32 %v119, %v102
    %v157 = vadd.f32 %v127, %v102
    %v158 = vadd.f32 %v135, %v102
    %v159 = vadd.f32 %v143, %v102
    %v160 = vtanh.pop %v144
    %v161 = vtanh.pop %v145
    %v162 = vtanh.pop %v146
    %v163 = vtanh.pop %v147
    %v164 = vtanh.pop %v148
    %v165 = vtanh.pop %v149
    %v166 = vtanh.pop %v150
    %v167 = vtanh.pop %v151
    %v168 = vtanh.pop %v152
    %v169 = vtanh.pop %v153
    %v170 = vtanh.pop %v154
    %v171 = vtanh.pop %v155
    %v172 = vtanh.pop %v156
    %v173 = vtanh.pop %v157
    %v174 = vtanh.pop %v158
    %v175 = vtanh.pop %v159
    %v176 = vsub.f32 %v108, %v160
    %v177 = vsub.f32 %v108, %v161
    %v178 = vsub.f32 %v108, %v162
    %v179 = vsub.f32 %v108, %v163
    %v180 = vsub.f32 %v109, %v164
    %v181 = vsub.f32 %v109, %v165
    %v182 = vsub.f32 %v109, %v166
    %v183 = vsub.f32 %v109, %v167
    %v184 = vsub.f32 %v110, %v168
    %v185 = vsub.f32 %v110, %v169
    %v186 = vsub.f32 %v110, %v170
    %v187 = vsub.f32 %v110, %v171
    %v188 = vsub.f32 %v111, %v172
    %v189 = vsub.f32 %v111, %v173
    %v190 = vsub.f32 %v111, %v174
    %v191 = vsub.f32 %v111, %v175
    %vm192 = vcmask 261120
    %v194 = vsel %vm192, %v28, 0
    %v197 = vsel %vm192, %v29, 0
    %199 = vmatpush.msra.mxu0 0.0
    %200 = vmatpush.msra.mxu0 0.0
    %201 = vmatpush.msra.mxu0 0.0
    %202 = vmatpush.msra.mxu0 0.0
    %203 = vmatpush.msra.mxu0 0.0
    %204 = vmatpush.msra.mxu0 0.0
    %205 = vmatpush.msra.mxu0 0.0
    %206 = vmatpush.msra.mxu0 0.0
    %207 = vmatpush.msra.mxu0 0.0
    %208 = vmatpush.msra.mxu0 0.0
    %209 = vmatpush.msra.mxu0 0.0
    %210 = vmatpush.msra.mxu0 0.0
    %211 = vmatpush.msra.mxu0 %v188
    %212 = vmatpush.msra.mxu0 %v184
    %213 = vmatpush.msra.mxu0 %v180
    %214 = vmatpush.msra.mxu0 %v176
    %215 = vmatmul.f32.gmra.mxu0 %v194
    %v216 = vpop.f32.mrf.mxu0
    %v217 = vadd.f32 0.0, %v216
    %218 = vmatmul.f32.gmra.mxu0 %v197
    %v219 = vpop.f32.mrf.mxu0
    %v220 = vadd.f32 0.0, %v219
    %221 = vdwg.mxu0
    %222 = vmatpush.msra.mxu0 0.0
    %223 = vmatpush.msra.mxu0 0.0
    %224 = vmatpush.msra.mxu0 0.0
    %225 = vmatpush.msra.mxu0 0.0
    %226 = vmatpush.msra.mxu0 0.0
    %227 = vmatpush.msra.mxu0 0.0
    %228 = vmatpush.msra.mxu0 0.0
    %229 = vmatpush.msra.mxu0 0.0
    %230 = vmatpush.msra.mxu0 0.0
    %231 = vmatpush.msra.mxu0 0.0
    %232 = vmatpush.msra.mxu0 0.0
    %233 = vmatpush.msra.mxu0 0.0
    %234 = vmatpush.msra.mxu0 %v189
    %235 = vmatpush.msra.mxu0 %v185
    %236 = vmatpush.msra.mxu0 %v181
    %237 = vmatpush.msra.mxu0 %v177
    %238 = vmatmul.f32.gmra.mxu0 %v194
    %v239 = vpop.f32.mrf.mxu0
    %v240 = vadd.f32 0.0, %v239
    %241 = vmatmul.f32.gmra.mxu0 %v197
    %v242 = vpop.f32.mrf.mxu0
    %v243 = vadd.f32 0.0, %v242
    %244 = vdwg.mxu0
    %245 = vmatpush.msra.mxu0 0.0
    %246 = vmatpush.msra.mxu0 0.0
    %247 = vmatpush.msra.mxu0 0.0
    %248 = vmatpush.msra.mxu0 0.0
    %249 = vmatpush.msra.mxu0 0.0
    %250 = vmatpush.msra.mxu0 0.0
    %251 = vmatpush.msra.mxu0 0.0
    %252 = vmatpush.msra.mxu0 0.0
    %253 = vmatpush.msra.mxu0 0.0
    %254 = vmatpush.msra.mxu0 0.0
    %255 = vmatpush.msra.mxu0 0.0
    %256 = vmatpush.msra.mxu0 0.0
    %257 = vmatpush.msra.mxu0 %v190
    %258 = vmatpush.msra.mxu0 %v186
    %259 = vmatpush.msra.mxu0 %v182
    %260 = vmatpush.msra.mxu0 %v178
    %261 = vmatmul.f32.gmra.mxu0 %v194
    %v262 = vpop.f32.mrf.mxu0
    %v263 = vadd.f32 0.0, %v262
    %264 = vmatmul.f32.gmra.mxu0 %v197
    %v265 = vpop.f32.mrf.mxu0
    %v266 = vadd.f32 0.0, %v265
    %267 = vdwg.mxu0
    %268 = vmatpush.msra.mxu0 0.0
    %269 = vmatpush.msra.mxu0 0.0
    %270 = vmatpush.msra.mxu0 0.0
    %271 = vmatpush.msra.mxu0 0.0
    %272 = vmatpush.msra.mxu0 0.0
    %273 = vmatpush.msra.mxu0 0.0
    %274 = vmatpush.msra.mxu0 0.0
    %275 = vmatpush.msra.mxu0 0.0
    %276 = vmatpush.msra.mxu0 0.0
    %277 = vmatpush.msra.mxu0 0.0
    %278 = vmatpush.msra.mxu0 0.0
    %279 = vmatpush.msra.mxu0 0.0
    %280 = vmatpush.msra.mxu0 %v191
    %281 = vmatpush.msra.mxu0 %v187
    %282 = vmatpush.msra.mxu0 %v183
    %283 = vmatpush.msra.mxu0 %v179
    %284 = vmatmul.f32.gmra.mxu0 %v194
    %v285 = vpop.f32.mrf.mxu0
    %v286 = vadd.f32 0.0, %v285
    %287 = vmatmul.f32.gmra.mxu0 %v197
    %v288 = vpop.f32.mrf.mxu0
    %v289 = vadd.f32 0.0, %v288
    %290 = vdwg.mxu0
    %v291 = vmul.f32 %v217, %v217
    %v292 = vmul.f32 %v240, %v240
    %v293 = vmul.f32 %v263, %v263
    %v294 = vmul.f32 %v286, %v286
    %v295 = vmul.f32 %v220, %v220
    %v296 = vmul.f32 %v243, %v243
    %v297 = vmul.f32 %v266, %v266
    %v298 = vmul.f32 %v289, %v289
    %v299 = vadd.f32 %v291, %v295
    %v300 = vrot.slane %v299, 4
    %v301 = vadd.f32 %v299, %v300
    %v302 = vrot.slane %v301, 2
    %v303 = vadd.f32 %v301, %v302
    %v304 = vrot.slane %v303, 1
    %v305 = vadd.f32 %v303, %v304
    %v306 = vadd.f32 %v292, %v296
    %v307 = vrot.slane %v306, 4
    %v308 = vadd.f32 %v306, %v307
    %v309 = vrot.slane %v308, 2
    %v310 = vadd.f32 %v308, %v309
    %v311 = vrot.slane %v310, 1
    %v312 = vadd.f32 %v310, %v311
    %v313 = vadd.f32 %v293, %v297
    %v314 = vrot.slane %v313, 4
    %v315 = vadd.f32 %v313, %v314
    %v316 = vrot.slane %v315, 2
    %v317 = vadd.f32 %v315, %v316
    %v318 = vrot.slane %v317, 1
    %v319 = vadd.f32 %v317, %v318
    %v320 = vadd.f32 %v294, %v298
    %v321 = vrot.slane %v320, 4
    %v322 = vadd.f32 %v320, %v321
    %v323 = vrot.slane %v322, 2
    %v324 = vadd.f32 %v322, %v323
    %v325 = vrot.slane %v324, 1
    %v326 = vadd.f32 %v324, %v325
    %v327 = vmax.f32 %v305, %v312
    %v328 = vmax.f32 %v327, %v319
    %v329 = vmax.f32 %v328, %v326
    %v330 = vrsqrt.pop %v329
    %v331 = vmul.f32 %v330, %v329
    %v332 = vmul.f32 %v331, %v330
    %v333 = vmul.f32 0.5, %v332
    %v334 = vsub.f32 1.5, %v333
    %v335 = vmul.f32 %v330, %v334
    %v336 = vmul.f32 %v329, %v335
    %vm337 = vcmp.eq.f32.partialorder %v329, inf
    %v338 = vsel %vm337, %v329, %v336
    %vm339 = vcmp.eq.f32.partialorder %v329, 0.0
    %v340 = vand.u32 %v329, 2147483648
    %v341 = vsel %vm339, %v340, %v338
    %342 = vst [vmem:[#allocation2] sm:$0x1] %v341
    // Predicated region
    $region18: #{tpu_custom_call.1} parent=1 // pred_check
      _
    $region19: #{tpu_custom_call.1} parent=1 // pred_check_branch
      %344 = sbr.rel (0) target = $region21
    $region20: #{tpu_custom_call.1} parent=1 // pred_region
      %346 = vsyncadd [#allocation3], 0
      %s348 = sshll.u32 [#allocation2], 4
      %s349 = int_to_ptr.vmem [resolvable:$true] %s348
      %s350 = sshll.u32 %s4, 4
      %s351 = int_to_ptr.hbm [resolvable:$true] %s350
      %353 = dma.vmem_to_hbm [thread:$0]  %s349, 16, %s351, [#allocation3]
    $region21: #{tpu_custom_call.1} parent=1 // pred_fallthru
      _
    // Predicated region
    $region22: #{tpu_custom_call.1} parent=1 // pred_check
      _
    $region23: #{tpu_custom_call.1} parent=1 // pred_check_branch
      %355 = sbr.rel (0) target = $region25
    $region24: #{tpu_custom_call.1} parent=1 // pred_region
      %357 = dma.done [#allocation3], 16
    $region25: #{tpu_custom_call.1} parent=1 // pred_fallthru
      _
    %358 = vsyncpa [#allocation3], 1

</llo_original>
